<compile_context>
chip_gen: v7x
topology: tpu7x:2x2x1
jax: 0.10.0
libtpu: 0.0.40
codegen_flags: <defaults>
</compile_context>

<pallas_src>
import functools

import jax
import jax.numpy as jnp
from jax.experimental import pallas as pl
from jax.experimental.pallas import tpu as pltpu


def cheby_layer_kernel(xT_ref, wT_ref, gamma_ref, beta_ref, oT_ref, *, deg, d_out, eps):
    # xT_ref:    (d_in, TB)         batch on the 128-wide lane axis
    # wT_ref:    (d_out+1, K*d_in)  last row = column-sums / d_out (folds the LN mean)
    # gamma_ref: (d_out, 1)
    # beta_ref:  (d_out, 1)
    # oT_ref:    (d_out, TB)
    u = jnp.tanh(xT_ref[...].astype(jnp.float32))        # lane-dense EUP tanh

    # Chebyshev recurrence (VPU only), stacked along SUBLANES -> (K*d_in, TB).
    K = deg + 1
    t_list = [jnp.ones_like(u)]
    if K > 1:
        t_list.append(u)
    for _ in range(2, K):
        t_list.append(2.0 * u * t_list[-1] - t_list[-2])
    t_all = jnp.concatenate(t_list, axis=0)

    # Single MXU matmul, N = TB lanes; the extra output row is the LayerNorm mean.
    y_aug = jnp.dot(wT_ref[...], t_all, preferred_element_type=jnp.float32)
    y = y_aug[:d_out, :]                                   # (d_out, TB)
    mean = y_aug[d_out:, :]                                # (1, TB), free from the MXU

    # LayerNorm over out_features (sublane axis): biased variance, like torch.
    centered = y - mean
    var = jnp.mean(centered * centered, axis=0, keepdims=True)   # (1, TB) sublane reduce
    scale = gamma_ref[...] * jax.lax.rsqrt(var + eps)            # -> (d_out, TB)
    oT_ref[...] = (centered * scale + beta_ref[...]).astype(oT_ref.dtype)


def prepare_cheby_weights(coeffs):
    """coeffs (in, out, K) -> W^T_aug (out+1, K*in); done ONCE outside the call path.

    Row o holds output-o weights against the basis ordered [k=0 block of in,
    k=1 block, ...].  The extra last row is the column sum divided by
    out_features, so the fused matmul also emits the LayerNorm mean.
    """
    d_in, d_out, K = coeffs.shape
    w2d = jnp.transpose(coeffs, (2, 0, 1)).reshape(K * d_in, d_out)   # (K*in, out)
    wT = w2d.T                                                        # (out, K*in)
    mean_row = jnp.sum(wT, axis=0, keepdims=True) / d_out             # (1, K*in)
    return jnp.concatenate([wT, mean_row], axis=0)                    # (out+1, K*in)


# ~7 MiB of f32 intermediates per tile at this cap; comfortably inside the
# default scoped VMEM on v7x (32 of 64 MiB) as well as v5e/v6e (128 MiB).
_MAX_TILE_B = 8192


def _pick_tile_b(B):
    """Batch is the lane axis: a tile must be a multiple of 128 or the full batch.

    One grid step up to _MAX_TILE_B rows: per-step overhead (~0.35us) dominates the
    sub-us of DMA these tiles need, so splitting (even for v7x's two TCs) is pure
    overhead until there is real work per step.
    """
    if B % 128 != 0 or B <= _MAX_TILE_B:
        return B                      # single full-array tile (block == full dim is legal)
    tile = _MAX_TILE_B
    while B % tile != 0:
        tile -= 128
    return tile


def cheby_layer_t(xT, wT_aug, gamma, beta, *, deg, eps=1e-5, tile_b=None, out_dtype=None):
    """Transposed-layout entry point: xT (in_features, B) -> y^T (out_features, B)."""
    d_in, B = xT.shape
    d_out_p1, KD = wT_aug.shape
    d_out = d_out_p1 - 1
    K = deg + 1
    assert KD == K * d_in
    if out_dtype is None:
        out_dtype = xT.dtype
    if tile_b is None:
        tile_b = _pick_tile_b(B)
    assert B % tile_b == 0, "batch must be divisible by the batch tile"

    gamma2 = gamma.reshape(d_out, 1).astype(jnp.float32)
    beta2 = beta.reshape(d_out, 1).astype(jnp.float32)

    kernel = functools.partial(cheby_layer_kernel, deg=deg, d_out=d_out, eps=eps)

    return pl.pallas_call(
        kernel,
        out_shape=jax.ShapeDtypeStruct((d_out, B), out_dtype),
        grid_spec=pltpu.PrefetchScalarGridSpec(
            num_scalar_prefetch=0,
            grid=(B // tile_b,),
            in_specs=[
                pl.BlockSpec((d_in, tile_b), lambda i: (0, i)),      # x^T tile, lane-dense
                pl.BlockSpec((d_out_p1, KD), lambda i: (0, 0)),      # W^T_aug, resident
                pl.BlockSpec((d_out, 1), lambda i: (0, 0)),          # gamma
                pl.BlockSpec((d_out, 1), lambda i: (0, 0)),          # beta
            ],
            out_specs=pl.BlockSpec((d_out, tile_b), lambda i: (0, i)),  # y^T, lane-dense store
        ),
        compiler_params=pltpu.CompilerParams(dimension_semantics=("parallel",)),
    )(xT, wT_aug, gamma2, beta2)


def cheby_layer(x, wT_aug, gamma, beta, *, deg, eps=1e-5, tile_b=None, out_dtype=None):
    """Convenience wrapper on (B, in) -> (B, out); transposes once outside the kernel.
    Callers that already keep feature-major activations should use cheby_layer_t."""
    yT = cheby_layer_t(x.T, wT_aug, gamma, beta, deg=deg, eps=eps,
                       tile_b=tile_b, out_dtype=out_dtype)
    return yT.T


def cheby_layer_ref(x, coeffs, gamma, beta, *, eps=1e-5):
    """Pure-JAX reference of the PyTorch forward pass (arccos/cos formulation)."""
    u = jnp.tanh(x.astype(jnp.float32))
    K = coeffs.shape[-1]
    theta = jnp.arccos(u)                                   # (B, in)
    ks = jnp.arange(K, dtype=jnp.float32)                   # (K,)
    T = jnp.cos(theta[..., None] * ks)                      # (B, in, K)
    y = jnp.einsum("bik,iok->bo", T, coeffs.astype(jnp.float32))
    mean = jnp.mean(y, axis=-1, keepdims=True)
    var = jnp.mean((y - mean) ** 2, axis=-1, keepdims=True)
    return ((y - mean) * jax.lax.rsqrt(var + eps) * gamma + beta).astype(x.dtype)


if __name__ == "__main__":
    # Small, deterministic setup consistent with the module:
    #   in_features=16, out_features=32, deg=3, batch of 128 flattened points.
    key = jax.random.PRNGKey(0)
    kx, kc = jax.random.split(key)

    B, in_features, out_features, deg = 128, 16, 32, 3
    K = deg + 1

    x = jax.random.normal(kx, (B, in_features), dtype=jnp.float32)

    # ChebyKAN-style init: N(0, 1/(in_features*(deg+1))); deterministic via PRNGKey(0).
    std = 1.0 / (in_features * K)
    coeffs = std * jax.random.normal(kc, (in_features, out_features, K), dtype=jnp.float32)

    # nn.LayerNorm default affine init.
    gamma = jnp.ones((out_features,), jnp.float32)
    beta = jnp.zeros((out_features,), jnp.float32)

    # Weight relayout (+ LayerNorm-mean fold) done once, outside the per-call path.
    wT_aug = prepare_cheby_weights(coeffs)

    out = cheby_layer(x, wT_aug, gamma, beta, deg=deg)
    out = jax.block_until_ready(out)

    ref = cheby_layer_ref(x, coeffs, gamma, beta)
    assert out.shape == (B, out_features)
    assert jnp.allclose(out, ref, atol=1e-4, rtol=1e-4)

    print("KERNEL_OK")
</pallas_src>

<mosaic_0001>
module attributes {stable_mosaic.version = 11 : i64} {
  func.func @cheby_layer_kernel(%arg0: i32, %arg1: memref<16x128xf32, #tpu.memory_space<vmem>>, %arg2: memref<33x64xf32, #tpu.memory_space<vmem>>, %arg3: memref<32x1xf32, #tpu.memory_space<vmem>>, %arg4: memref<32x1xf32, #tpu.memory_space<vmem>>, %arg5: memref<32x128xf32, #tpu.memory_space<vmem>>) attributes {dimension_semantics = [#tpu.dimension_semantics<parallel>], iteration_bounds = array<i64: 1>, scalar_prefetch = 0 : i64, scratch_operands = 0 : i64, tpu.core_type = #tpu.core_type<tc>, window_params = [{transform_indices = @transform_0, window_bounds = array<i64: 16, 128>}, {pipeline_mode = #tpu.pipeline_mode<synchronous>, transform_indices = @transform_1, window_bounds = array<i64: 33, 64>}, {pipeline_mode = #tpu.pipeline_mode<synchronous>, transform_indices = @transform_2, window_bounds = array<i64: 32, 1>}, {pipeline_mode = #tpu.pipeline_mode<synchronous>, transform_indices = @transform_3, window_bounds = array<i64: 32, 1>}, {transform_indices = @transform_4, window_bounds = array<i64: 32, 128>}]} {
    %c0 = arith.constant 0 : index
    %c0_0 = arith.constant 0 : index
    %0 = vector.load %arg1[%c0, %c0_0] : memref<16x128xf32, #tpu.memory_space<vmem>>, vector<16x128xf32>
    %1 = math.tanh %0 : vector<16x128xf32>
    %cst = arith.constant 1.000000e+00 : f32
    %2 = vector.broadcast %cst : f32 to vector<16x128xf32>
    %cst_1 = arith.constant 2.000000e+00 : f32
    %3 = vector.broadcast %cst_1 : f32 to vector<16x128xf32>
    %4 = arith.mulf %3, %1 : vector<16x128xf32>
    %5 = arith.mulf %4, %1 : vector<16x128xf32>
    %6 = arith.subf %5, %2 : vector<16x128xf32>
    %cst_2 = arith.constant 2.000000e+00 : f32
    %7 = vector.broadcast %cst_2 : f32 to vector<16x128xf32>
    %8 = arith.mulf %7, %1 : vector<16x128xf32>
    %9 = arith.mulf %8, %6 : vector<16x128xf32>
    %10 = arith.subf %9, %1 : vector<16x128xf32>
    %11 = tpu.concatenate %2, %1, %6, %10 in 0 : vector<16x128xf32>, vector<16x128xf32>, vector<16x128xf32>, vector<16x128xf32> -> vector<64x128xf32>
    %c0_3 = arith.constant 0 : index
    %c0_4 = arith.constant 0 : index
    %12 = vector.load %arg2[%c0_3, %c0_4] : memref<33x64xf32, #tpu.memory_space<vmem>>, vector<33x64xf32>
    %cst_5 = arith.constant dense<0.000000e+00> : vector<33x128xf32>
    %13 = tpu.matmul %12, %11, %cst_5 {dimension_numbers = #tpu.dot_dimension_numbers<[1], [0], [0], [1], [0, 0, 1, 1], [], []>} : vector<33x64xf32>, vector<64x128xf32>, vector<33x128xf32> -> vector<33x128xf32>
    %14 = vector.extract_strided_slice %13 {offsets = [0, 0], sizes = [32, 128], strides = [1, 1]} : vector<33x128xf32> to vector<32x128xf32>
    %15 = vector.extract_strided_slice %13 {offsets = [32, 0], sizes = [1, 128], strides = [1, 1]} : vector<33x128xf32> to vector<1x128xf32>
    %16 = vector.broadcast %15 : vector<1x128xf32> to vector<32x128xf32>
    %17 = arith.subf %14, %16 : vector<32x128xf32>
    %18 = arith.mulf %17, %17 : vector<32x128xf32>
    %cst_6 = arith.constant dense<0.000000e+00> : vector<128xf32>
    %19 = vector.multi_reduction <add>, %18, %cst_6 [0] : vector<32x128xf32> to vector<128xf32>
    %20 = vector.shape_cast %19 : vector<128xf32> to vector<1x128xf32>
    %cst_7 = arith.constant 3.200000e+01 : f32
    %21 = vector.broadcast %cst_7 : f32 to vector<1x128xf32>
    %22 = arith.divf %20, %21 : vector<1x128xf32>
    %c0_8 = arith.constant 0 : index
    %c0_9 = arith.constant 0 : index
    %23 = vector.load %arg3[%c0_8, %c0_9] : memref<32x1xf32, #tpu.memory_space<vmem>>, vector<32x1xf32>
    %cst_10 = arith.constant 9.99999974E-6 : f32
    %24 = vector.broadcast %cst_10 : f32 to vector<1x128xf32>
    %25 = arith.addf %22, %24 : vector<1x128xf32>
    %26 = math.rsqrt %25 : vector<1x128xf32>
    %27 = vector.broadcast %23 : vector<32x1xf32> to vector<32x128xf32>
    %28 = vector.broadcast %26 : vector<1x128xf32> to vector<32x128xf32>
    %29 = arith.mulf %27, %28 : vector<32x128xf32>
    %30 = arith.mulf %17, %29 : vector<32x128xf32>
    %c0_11 = arith.constant 0 : index
    %c0_12 = arith.constant 0 : index
    %31 = vector.load %arg4[%c0_11, %c0_12] : memref<32x1xf32, #tpu.memory_space<vmem>>, vector<32x1xf32>
    %32 = vector.broadcast %31 : vector<32x1xf32> to vector<32x128xf32>
    %33 = arith.addf %30, %32 : vector<32x128xf32>
    %c0_13 = arith.constant 0 : index
    %c0_14 = arith.constant 0 : index
    %34 = vector.load %arg5[%c0_13, %c0_14] : memref<32x128xf32, #tpu.memory_space<vmem>>, vector<32x128xf32>
    tpu.vector_store %arg5[%c0_13, %c0_14], %33 {strides = array<i32>} : memref<32x128xf32, #tpu.memory_space<vmem>>, vector<32x128xf32>,
    return
  }
  func.func @transform_0(%arg0: i32) -> (i32, i32) {
    %c0_i32 = arith.constant 0 : i32
    %c0_i32_0 = arith.constant 0 : i32
    return %c0_i32, %arg0 : i32, i32
  }
  func.func @transform_1(%arg0: i32) -> (i32, i32) {
    %c0_i32 = arith.constant 0 : i32
    %c0_i32_0 = arith.constant 0 : i32
    %c0_i32_1 = arith.constant 0 : i32
    return %c0_i32, %c0_i32_0 : i32, i32
  }
  func.func @transform_2(%arg0: i32) -> (i32, i32) {
    %c0_i32 = arith.constant 0 : i32
    %c0_i32_0 = arith.constant 0 : i32
    %c0_i32_1 = arith.constant 0 : i32
    return %c0_i32, %c0_i32_0 : i32, i32
  }
  func.func @transform_3(%arg0: i32) -> (i32, i32) {
    %c0_i32 = arith.constant 0 : i32
    %c0_i32_0 = arith.constant 0 : i32
    %c0_i32_1 = arith.constant 0 : i32
    return %c0_i32, %c0_i32_0 : i32, i32
  }
  func.func @transform_4(%arg0: i32) -> (i32, i32) {
    %c0_i32 = arith.constant 0 : i32
    %c0_i32_0 = arith.constant 0 : i32
    return %c0_i32, %arg0 : i32, i32
  }
}

</mosaic_0001>

<llo_original>
// kernel: tpu_custom_call.1
$region0: #{tpu_custom_call.1}
  #allocation0 [shape = 'u32[]', space=smem, size = 0x4, offset = 0x4, fixed_abs, tag = 'smem constant byte address 0x4 - core index']
  #allocation1 [shape = 'u32[144,128]{1,0:T(1,128)}', space=vmem, size = 0x12000, scoped, tag = 'internal scratch']
  %s0 = inlined_call_operand.vmem [shape: f32[16,128], index: 0, kind: input, shape index: {}]
  %s1 = inlined_call_operand.vmem [shape: f32[33,64], index: 1, kind: input, shape index: {}]
  %s2 = inlined_call_operand.vmem [shape: f32[32,1], index: 2, kind: input, shape index: {}]
  %s3 = inlined_call_operand.vmem [shape: f32[32,1], index: 3, kind: input, shape index: {}]
  %s4 = inlined_call_operand.hbm [shape: f32[32,128], index: 4, kind: output, shape index: {}]
  %s5 = sld [smem:[#allocation0]]
  $region26: #{tpu_custom_call.1} parent=0
    _
  %s7 = ssub.s32 1, %s5
  %s8 = scalar_select 0, %s7, %s5
  $region1: #{tpu_custom_call.1} parent=0
    #allocation2 [shape = 'u8[16384]{0}', space=vmem, size = 0x4000, scoped, tag = 'output window, operand 0, single buffered']
    #allocation3 [shape = 's32[1]{0}', space=sflag, size = 0x4, scoped, tag = 'scoped memory for tpu_custom_call.1']
    %9 = vsyncpa [#allocation3], 0
    // Predicated region
    $region2: #{tpu_custom_call.1} parent=1 // pred_check
      _
    $region3: #{tpu_custom_call.1} parent=1 // pred_check_branch
      %11 = sbr.rel (0) target = $region5
    $region4: #{tpu_custom_call.1} parent=1 // pred_region
      _
    $region5: #{tpu_custom_call.1} parent=1 // pred_fallthru
      _
    // Predicated region
    $region6: #{tpu_custom_call.1} parent=1 // pred_check
      _
    $region7: #{tpu_custom_call.1} parent=1 // pred_check_branch
      %13 = sbr.rel (0) target = $region9
    $region8: #{tpu_custom_call.1} parent=1 // pred_region
      _
    $region9: #{tpu_custom_call.1} parent=1 // pred_fallthru
      _
    // Predicated region
    $region10: #{tpu_custom_call.1} parent=1 // pred_check
      _
    $region11: #{tpu_custom_call.1} parent=1 // pred_check_branch
      %15 = sbr.rel (0) target = $region13
    $region12: #{tpu_custom_call.1} parent=1 // pred_region
      _
    $region13: #{tpu_custom_call.1} parent=1 // pred_fallthru
      _
    // Predicated region
    $region14: #{tpu_custom_call.1} parent=1 // pred_check
      _
    $region15: #{tpu_custom_call.1} parent=1 // pred_check_branch
      %17 = sbr.rel (0) target = $region17
    $region16: #{tpu_custom_call.1} parent=1 // pred_region
      _
    $region17: #{tpu_custom_call.1} parent=1 // pred_fallthru
      _
    %v18 = vld [vmem:[%s0] sm:$0xff]
    %v19 = vld [vmem:[%s0 + $0x8] sm:$0xff]
    %v20 = vtanh.pop %v18
    %v21 = vtanh.pop %v19
    %v22 = vmul.f32 %v20, 2.0
    %v23 = vmul.f32 %v21, 2.0
    %v24 = vmul.f32 %v22, %v20
    %v25 = vmul.f32 %v23, %v21
    %v26 = vsub.f32 %v24, 1.0
    %v27 = vsub.f32 %v25, 1.0
    %v28 = vmul.f32 %v22, %v26
    %v29 = vmul.f32 %v23, %v27
    %v30 = vsub.f32 %v28, %v20
    %v31 = vsub.f32 %v29, %v21
    %v32 = vld [vmem:[%s1] sm:$0xff]
    %v33 = vld [vmem:[%s1 + $0x8] sm:$0xff]
    %v34 = vld [vmem:[%s1 + $0x10] sm:$0xff]
    %v35 = vld [vmem:[%s1 + $0x18] sm:$0xff]
    %v36 = vld [vmem:[%s1 + $0x20] sm:$0x1]
    %vm37 = vcmask 523264
    %v39 = vsel %vm37, %v32, 0
    %v42 = vsel %vm37, %v33, 0
    %v45 = vsel %vm37, %v34, 0
    %v48 = vsel %vm37, %v35, 0
    %v51 = vsel %vm37, %v36, 0
    %53 = vmatprep.subr.mxu0 0.0
    %54 = vmatpush1.msra.mxu0 1.0
    %55 = vmatprep.subr.mxu0 0.0
    %56 = vmatpush1.msra.mxu0 1.0
    %57 = vmatprep.subr.mxu0 0.0
    %58 = vmatpush1.msra.mxu0 %v20
    %59 = vmatprep.subr.mxu0 0.0
    %60 = vmatpush1.msra.mxu0 %v21
    %61 = vmatprep.subr.mxu0 0.0
    %62 = vmatpush1.msra.mxu0 %v26
    %63 = vmatprep.subr.mxu0 0.0
    %64 = vmatpush1.msra.mxu0 %v27
    %65 = vmatprep.subr.mxu0 0.0
    %66 = vmatpush1.msra.mxu0 %v30
    %67 = vmatprep.subr.mxu0 0.0
    %68 = vmatpush1.msra.mxu0 %v31
    %69 = vmatprep.subr.mxu0 0.0
    %70 = vmatpush1.msra.mxu0 0.0
    %71 = vmatprep.subr.mxu0 0.0
    %72 = vmatpush1.msra.mxu0 0.0
    %73 = vmatprep.subr.mxu0 0.0
    %74 = vmatpush1.msra.mxu0 0.0
    %75 = vmatprep.subr.mxu0 0.0
    %76 = vmatpush1.msra.mxu0 0.0
    %77 = vmatprep.subr.mxu0 0.0
    %78 = vmatpush1.msra.mxu0 0.0
    %79 = vmatprep.subr.mxu0 0.0
    %80 = vmatpush1.msra.mxu0 0.0
    %81 = vmatprep.subr.mxu0 0.0
    %82 = vmatpush1.msra.mxu0 0.0
    %83 = vmatprep.subr.mxu0 0.0
    %84 = vmatpush1.msra.mxu0 0.0
    %85 = vmatprep.subr.mxu0 0.0
    %86 = vmatpush1.msra.mxu0 0.0
    %87 = vmatprep.subr.mxu0 0.0
    %88 = vmatpush1.msra.mxu0 0.0
    %89 = vmatprep.subr.mxu0 0.0
    %90 = vmatpush1.msra.mxu0 0.0
    %91 = vmatprep.subr.mxu0 0.0
    %92 = vmatpush1.msra.mxu0 0.0
    %93 = vmatprep.subr.mxu0 0.0
    %94 = vmatpush1.msra.mxu0 0.0
    %95 = vmatprep.subr.mxu0 0.0
    %96 = vmatpush1.msra.mxu0 0.0
    %97 = vmatprep.subr.mxu0 0.0
    %98 = vmatpush1.msra.mxu0 0.0
    %99 = vmatprep.subr.mxu0 0.0
    %100 = vmatpush1.msra.mxu0 0.0
    %101 = vmatprep.subr.mxu0 0.0
    %102 = vmatpush1.msra.mxu0 0.0
    %103 = vmatprep.subr.mxu0 0.0
    %104 = vmatpush1.msra.mxu0 0.0
    %105 = vmatprep.subr.mxu0 0.0
    %106 = vmatpush1.msra.mxu0 0.0
    %107 = vmatprep.subr.mxu0 0.0
    %108 = vmatpush1.msra.mxu0 0.0
    %109 = vmatprep.subr.mxu0 0.0
    %110 = vmatpush1.msra.mxu0 0.0
    %111 = vmatprep.subr.mxu0 0.0
    %112 = vmatpush1.msra.mxu0 0.0
    %113 = vmatprep.subr.mxu0 0.0
    %114 = vmatpush1.msra.mxu0 0.0
    %115 = vmatprep.subr.mxu0 0.0
    %116 = vmatpush1.msra.mxu0 0.0
    %117 = vmatprep.mubr.f32.mxu0 0.0
    %118 = vmatmul.mubr.f32.gmra.mrb[0].mxu0 %v39
    %v119 = vpop.f32.mrb[0].mxu0
    %v120 = vadd.f32 0.0, %v119
    %v121 = vpop.f32.mrb[0].mxu0
    %122 = vmatprep.mubr.f32.mxu0 0.0
    %123 = vmatmul.mubr.f32.gmra.mrb[0].mxu0 %v42
    %v124 = vpop.f32.mrb[0].mxu0
    %v125 = vadd.f32 0.0, %v124
    %v126 = vpop.f32.mrb[0].mxu0
    %127 = vmatprep.mubr.f32.mxu0 0.0
    %128 = vmatmul.mubr.f32.gmra.mrb[0].mxu0 %v45
    %v129 = vpop.f32.mrb[0].mxu0
    %v130 = vadd.f32 0.0, %v129
    %v131 = vpop.f32.mrb[0].mxu0
    %132 = vmatprep.mubr.f32.mxu0 0.0
    %133 = vmatmul.mubr.f32.gmra.mrb[0].mxu0 %v48
    %v134 = vpop.f32.mrb[0].mxu0
    %v135 = vadd.f32 0.0, %v134
    %v136 = vpop.f32.mrb[0].mxu0
    %137 = vmatprep.mubr.f32.mxu0 0.0
    %138 = vmatmul.mubr.f32.gmra.mrb[0].mxu0 %v51
    %v139 = vpop.f32.mrb[0].mxu0
    %v140 = vadd.f32 0.0, %v139
    %v141 = vpop.f32.mrb[0].mxu0
    %142 = vdwg.mxu0
    %v143 = vlaneseq
    %v144 = vshrl.u32 %v143, 7
    %v145 = vsub.s32 0, %v144
    %v146 = vrot.slane %v140, %v145
    %v147 = vsub.f32 %v120, %v146
    %v148 = vsub.f32 %v125, %v146
    %v149 = vsub.f32 %v130, %v146
    %v150 = vsub.f32 %v135, %v146
    %v151 = vmul.f32 %v147, %v147
    %v152 = vmul.f32 %v148, %v148
    %v153 = vmul.f32 %v149, %v149
    %v154 = vmul.f32 %v150, %v150
    %v155 = vadd.f32 %v151, %v152
    %v156 = vadd.f32 %v155, %v153
    %v157 = vadd.f32 %v156, %v154
    %v158 = vrot.slane %v157, 4
    %v159 = vadd.f32 %v157, %v158
    %v160 = vrot.slane %v159, 2
    %v161 = vadd.f32 %v159, %v160
    %v162 = vrot.slane %v161, 1
    %v163 = vadd.f32 %v161, %v162
    %v164 = vrcp.pop 32.0
    %v165 = vmul.f32 %v163, %v164
    %v166 = vld [vmem:[%s2] sm:$0xff]
    %v167 = vld [vmem:[%s2 + $0x8] sm:$0xff]
    %v168 = vld [vmem:[%s2 + $0x10] sm:$0xff]
    %v169 = vld [vmem:[%s2 + $0x18] sm:$0xff]
    %v170 = vadd.f32 %v165, 1e-05
    %v171 = vrsqrt.pop %v170
    %173 = vset.pattern.permute.xlu0 0
    %174 = vperm.xlu0 %173, %v166
    %v175 = vpop.permute.xlu0 %174
    %178 = vset.pattern.permute.xlu0 0
    %179 = vperm.xlu0 %178, %v167
    %v180 = vpop.permute.xlu0 %179
    %183 = vset.pattern.permute.xlu0 0
    %184 = vperm.xlu0 %183, %v168
    %v185 = vpop.permute.xlu0 %184
    %188 = vset.pattern.permute.xlu0 0
    %189 = vperm.xlu0 %188, %v169
    %v190 = vpop.permute.xlu0 %189
    %v192 = vmul.f32 %v175, %v171
    %v193 = vmul.f32 %v180, %v171
    %v194 = vmul.f32 %v185, %v171
    %v195 = vmul.f32 %v190, %v171
    %v196 = vmul.f32 %v147, %v192
    %v197 = vmul.f32 %v148, %v193
    %v198 = vmul.f32 %v149, %v194
    %v199 = vmul.f32 %v150, %v195
    %v200 = vld [vmem:[%s3] sm:$0xff]
    %v201 = vld [vmem:[%s3 + $0x8] sm:$0xff]
    %v202 = vld [vmem:[%s3 + $0x10] sm:$0xff]
    %v203 = vld [vmem:[%s3 + $0x18] sm:$0xff]
    %205 = vset.pattern.permute.xlu0 0
    %206 = vperm.xlu0 %205, %v200
    %v207 = vpop.permute.xlu0 %206
    %210 = vset.pattern.permute.xlu0 0
    %211 = vperm.xlu0 %210, %v201
    %v212 = vpop.permute.xlu0 %211
    %215 = vset.pattern.permute.xlu0 0
    %216 = vperm.xlu0 %215, %v202
    %v217 = vpop.permute.xlu0 %216
    %220 = vset.pattern.permute.xlu0 0
    %221 = vperm.xlu0 %220, %v203
    %v222 = vpop.permute.xlu0 %221
    %v224 = vadd.f32 %v196, %v207
    %v225 = vadd.f32 %v197, %v212
    %v226 = vadd.f32 %v198, %v217
    %v227 = vadd.f32 %v199, %v222
    %228 = vst [vmem:[#allocation2] sm:$0xff] %v224
    %229 = vst [vmem:[#allocation2 + $0x8] sm:$0xff] %v225
    %230 = vst [vmem:[#allocation2 + $0x10] sm:$0xff] %v226
    %231 = vst [vmem:[#allocation2 + $0x18] sm:$0xff] %v227
    // Predicated region
    $region18: #{tpu_custom_call.1} parent=1 // pred_check
      _
    $region19: #{tpu_custom_call.1} parent=1 // pred_check_branch
      %233 = sbr.rel (0) target = $region21
    $region20: #{tpu_custom_call.1} parent=1 // pred_region
      %s235 = ssub.s32 512, 512
      %236 = vsyncadd [#allocation3], %s235
      %s237 = sshll.u32 [#allocation2], 4
      %s238 = int_to_ptr.vmem [resolvable:$true] %s237
      %243 = dma.vmem_to_hbm [thread:$0]  %s238, 512, %s4, [#allocation3], 128, 128, 8
    $region21: #{tpu_custom_call.1} parent=1 // pred_fallthru
      _
    // Predicated region
    $region22: #{tpu_custom_call.1} parent=1 // pred_check
      _
    $region23: #{tpu_custom_call.1} parent=1 // pred_check_branch
      %245 = sbr.rel (0) target = $region25
    $region24: #{tpu_custom_call.1} parent=1 // pred_region
      %246 = dma.done [#allocation3], 512
    $region25: #{tpu_custom_call.1} parent=1 // pred_fallthru
      _
    %247 = vsyncpa [#allocation3], 1

</llo_original>
